<compile_context>
chip_gen: v7x
topology: tpu7x:2x2x1
jax: 0.10.0
libtpu: 0.0.40
codegen_flags: <defaults>
</compile_context>

<pallas_src>
import jax
import jax.numpy as jnp
from jax import lax
from jax.experimental import pallas as pl
from jax.experimental.pallas import tpu as pltpu

IN_DIM = 784          # 1 * 28 * 28
HIDDEN = 128
OUT_DIM = 1
SUBLANES = 8          # second-minor tile size; row 0 carries the real logits


def _discriminator_kernel(x_ref, w1_ref, b1_ref, w2t_ref, b2_ref, o_ref):
    # x:   (tb, 784)  bf16      w1:  (784, 128) bf16     b1: (1, 128) f32
    # w2t: (8, 128)   bf16 (row 0 = W2^T, rows 1..7 zero)
    # b2:  (1, 1)     f32 scalar in SMEM
    # o:   (8, tb)    f32 (row 0 = real probabilities)
    h = jnp.dot(x_ref[...], w1_ref[...],
                preferred_element_type=jnp.float32)          # (tb, 128) f32 acc
    h = h + b1_ref[...]                                      # bias (VPU, f32)
    h = jnp.maximum(h, 0.2 * h)                              # LeakyReLU(0.2)

    # Second layer in transposed orientation so the logits come out lane-dense:
    #   (8, 128) . (tb, 128)^T -> (8, tb)   (contraction over both lane dims)
    y = lax.dot_general(w2t_ref[...], h.astype(jnp.bfloat16),
                        dimension_numbers=(((1,), (1,)), ((), ())),
                        preferred_element_type=jnp.float32)  # (8, tb) f32
    y = y + b2_ref[0, 0]

    # Sigmoid: exp on the EUP, approx reciprocal on the EUP (free slots).
    o_ref[...] = pl.reciprocal(1.0 + jnp.exp(-y), approx=True).astype(o_ref.dtype)


def discriminator_forward(x, w1, b1, w2, b2, *, tile_b=512):
    """x: (B, 1, 28, 28) or (B, 784), any float dtype -> (B, 1) f32 probs."""
    B = x.shape[0]
    x2 = x.reshape(B, IN_DIM)
    if x2.dtype != jnp.bfloat16:
        # NOTE: callers should pass bf16 so this cast fuses with the producer
        # of x instead of being a standalone HBM pass.
        x2 = x2.astype(jnp.bfloat16)

    # One-time parameter prep (tiny; constant-folds / fuses under jit).
    w1_bf = w1.astype(jnp.bfloat16)                              # (784, 128)
    b1_2d = b1.reshape(1, HIDDEN).astype(jnp.float32)            # (1, 128)
    w2t_pad = jnp.zeros((SUBLANES, HIDDEN), jnp.bfloat16)
    w2t_pad = w2t_pad.at[0, :].set(w2.reshape(HIDDEN).astype(jnp.bfloat16))
    b2_sc = b2.reshape(1, 1).astype(jnp.float32)                 # SMEM scalar

    tb = B if B < tile_b else tile_b                  # tile_b: multiple of 16
    num_tiles = pl.cdiv(B, tb)

    # Advisory cost hint so XLA can overlap this small custom call.
    cost = pl.CostEstimate(
        flops=2 * B * (IN_DIM * HIDDEN + HIDDEN * SUBLANES),
        transcendentals=num_tiles * SUBLANES * tb,
        bytes_accessed=(B * IN_DIM * 2                 # x (bf16)
                        + IN_DIM * HIDDEN * 2          # W1 (bf16)
                        + HIDDEN * 4                   # b1
                        + SUBLANES * HIDDEN * 2 + 4    # W2^T pad, b2
                        + num_tiles * SUBLANES * tb * 4),  # output tiles
    )

    out = pl.pallas_call(
        _discriminator_kernel,
        out_shape=jax.ShapeDtypeStruct((num_tiles * SUBLANES, tb), jnp.float32),
        grid_spec=pltpu.PrefetchScalarGridSpec(
            num_scalar_prefetch=0,
            grid=(num_tiles,),
            in_specs=[
                pl.BlockSpec((tb, IN_DIM), lambda i: (i, 0)),        # x tile
                pl.BlockSpec((IN_DIM, HIDDEN), lambda i: (0, 0)),    # W1 resident
                pl.BlockSpec((1, HIDDEN), lambda i: (0, 0)),         # b1 resident
                pl.BlockSpec((SUBLANES, HIDDEN), lambda i: (0, 0)),  # W2^T resident
                pl.BlockSpec(memory_space=pltpu.MemorySpace.SMEM),   # b2 scalar
            ],
            out_specs=pl.BlockSpec((SUBLANES, tb), lambda i: (i, 0)),
        ),
        compiler_params=pltpu.CompilerParams(
            dimension_semantics=("parallel",),          # batch axis -> megacore
        ),
        cost_estimate=cost,
    )(x2, w1_bf, b1_2d, w2t_pad, b2_sc)

    # Row 0 of each (8, tb) output tile carries the real probabilities.
    probs = out.reshape(num_tiles, SUBLANES, tb)[:, 0, :].reshape(num_tiles * tb)
    return probs[:B].reshape(B, OUT_DIM)


def init_params(key):
    """Deterministic init mimicking nn.Linear's uniform(-1/sqrt(fan_in), +)."""
    k1, k2, k3, k4 = jax.random.split(key, 4)
    lim1 = 1.0 / jnp.sqrt(jnp.float32(IN_DIM))
    lim2 = 1.0 / jnp.sqrt(jnp.float32(HIDDEN))
    # Stored as (in_features, out_features) so the kernel uses x @ W.
    w1 = jax.random.uniform(k1, (IN_DIM, HIDDEN), jnp.float32, -lim1, lim1)
    b1 = jax.random.uniform(k2, (HIDDEN,), jnp.float32, -lim1, lim1)
    w2 = jax.random.uniform(k3, (HIDDEN, OUT_DIM), jnp.float32, -lim2, lim2)
    b2 = jax.random.uniform(k4, (OUT_DIM,), jnp.float32, -lim2, lim2)
    return w1, b1, w2, b2


if __name__ == "__main__":
    key = jax.random.PRNGKey(0)
    k_param, k_x = jax.random.split(key)

    w1, b1, w2, b2 = init_params(k_param)

    batch = 8
    # MNIST-like input in [0, 1), NCHW as the PyTorch module expects.
    x = jax.random.uniform(k_x, (batch, 1, 28, 28), dtype=jnp.float32)

    out = discriminator_forward(x, w1, b1, w2, b2)
    out = jax.block_until_ready(out)

    # Pure-JAX f32 reference (kernel uses bf16 matmul inputs -> loose tolerance).
    x_flat = x.reshape(batch, IN_DIM)
    h_ref = x_flat @ w1 + b1
    h_ref = jnp.maximum(h_ref, 0.2 * h_ref)
    ref = jax.nn.sigmoid(h_ref @ w2 + b2)

    assert out.shape == (batch, 1), out.shape
    # approx reciprocal may overshoot [0,1] by ~1e-3 -> loose bound check
    assert jnp.all((out >= -1e-3) & (out <= 1.0 + 1e-3))
    assert jnp.allclose(out, ref, atol=2e-2, rtol=2e-2), (
        float(jnp.max(jnp.abs(out - ref))))

    print("KERNEL_OK")
</pallas_src>

<mosaic_0001>
module attributes {stable_mosaic.version = 11 : i64} {
  func.func @_discriminator_kernel(%arg0: i32, %arg1: memref<8x784xbf16, #tpu.memory_space<vmem>>, %arg2: memref<784x128xbf16, #tpu.memory_space<vmem>>, %arg3: memref<1x128xf32, #tpu.memory_space<vmem>>, %arg4: memref<8x128xbf16, #tpu.memory_space<vmem>>, %arg5: memref<1x1xf32, #tpu.memory_space<smem>>, %arg6: memref<8x8xf32, #tpu.memory_space<vmem>>) attributes {dimension_semantics = [#tpu.dimension_semantics<parallel>], iteration_bounds = array<i64: 1>, scalar_prefetch = 0 : i64, scratch_operands = 0 : i64, tpu.core_type = #tpu.core_type<tc>, window_params = [{transform_indices = @transform_0, window_bounds = array<i64: 8, 784>}, {pipeline_mode = #tpu.pipeline_mode<synchronous>, transform_indices = @transform_1, window_bounds = array<i64: 784, 128>}, {pipeline_mode = #tpu.pipeline_mode<synchronous>, transform_indices = @transform_2, window_bounds = array<i64: 1, 128>}, {pipeline_mode = #tpu.pipeline_mode<synchronous>, transform_indices = @transform_3, window_bounds = array<i64: 8, 128>}, {transform_indices = @transform_4, window_bounds = array<i64: 1, 1>}, {transform_indices = @transform_5, window_bounds = array<i64: 8, 8>}]} {
    %c0 = arith.constant 0 : index
    %c0_0 = arith.constant 0 : index
    %0 = vector.load %arg1[%c0, %c0_0] : memref<8x784xbf16, #tpu.memory_space<vmem>>, vector<8x784xbf16>
    %c0_1 = arith.constant 0 : index
    %c0_2 = arith.constant 0 : index
    %1 = vector.load %arg2[%c0_1, %c0_2] : memref<784x128xbf16, #tpu.memory_space<vmem>>, vector<784x128xbf16>
    %cst = arith.constant dense<0.000000e+00> : vector<8x128xf32>
    %2 = tpu.matmul %0, %1, %cst {dimension_numbers = #tpu.dot_dimension_numbers<[1], [0], [0], [1], [0, 0, 1, 1], [], []>} : vector<8x784xbf16>, vector<784x128xbf16>, vector<8x128xf32> -> vector<8x128xf32>
    %c0_3 = arith.constant 0 : index
    %c0_4 = arith.constant 0 : index
    %3 = vector.load %arg3[%c0_3, %c0_4] : memref<1x128xf32, #tpu.memory_space<vmem>>, vector<1x128xf32>
    %4 = vector.broadcast %3 : vector<1x128xf32> to vector<8x128xf32>
    %5 = arith.addf %2, %4 : vector<8x128xf32>
    %cst_5 = arith.constant 2.000000e-01 : f32
    %6 = vector.broadcast %cst_5 : f32 to vector<8x128xf32>
    %7 = arith.mulf %6, %5 : vector<8x128xf32>
    %8 = arith.maximumf %5, %7 : vector<8x128xf32>
    %c0_6 = arith.constant 0 : index
    %c0_7 = arith.constant 0 : index
    %9 = vector.load %arg4[%c0_6, %c0_7] : memref<8x128xbf16, #tpu.memory_space<vmem>>, vector<8x128xbf16>
    %10 = arith.truncf %8 : vector<8x128xf32> to vector<8x128xbf16>
    %cst_8 = arith.constant dense<0.000000e+00> : vector<8x8xf32>
    %11 = tpu.matmul %9, %10, %cst_8 {dimension_numbers = #tpu.dot_dimension_numbers<[1], [1], [0], [0], [0, 0, 1, 0], [], []>} : vector<8x128xbf16>, vector<8x128xbf16>, vector<8x8xf32> -> vector<8x8xf32>
    %c0_9 = arith.constant 0 : index
    %c0_10 = arith.constant 0 : index
    %12 = memref.load %arg5[%c0_9, %c0_10] : memref<1x1xf32, #tpu.memory_space<smem>>
    %13 = vector.broadcast %12 : f32 to vector<8x8xf32>
    %14 = arith.addf %11, %13 : vector<8x8xf32>
    %cst_11 = arith.constant 0.000000e+00 : f32
    %15 = vector.broadcast %cst_11 : f32 to vector<8x8xf32>
    %16 = arith.subf %15, %14 : vector<8x8xf32>
    %17 = math.exp %16 : vector<8x8xf32>
    %cst_12 = arith.constant 1.000000e+00 : f32
    %18 = vector.broadcast %cst_12 : f32 to vector<8x8xf32>
    %19 = arith.addf %18, %17 : vector<8x8xf32>
    %20 = tpu.reciprocal %19 {approx = true} : vector<8x8xf32> -> vector<8x8xf32>
    %c0_13 = arith.constant 0 : index
    %c0_14 = arith.constant 0 : index
    %21 = vector.load %arg6[%c0_13, %c0_14] : memref<8x8xf32, #tpu.memory_space<vmem>>, vector<8x8xf32>
    tpu.vector_store %arg6[%c0_13, %c0_14], %20 {strides = array<i32>} : memref<8x8xf32, #tpu.memory_space<vmem>>, vector<8x8xf32>,
    return
  }
  func.func @transform_0(%arg0: i32) -> (i32, i32) {
    %c0_i32 = arith.constant 0 : i32
    %c0_i32_0 = arith.constant 0 : i32
    return %arg0, %c0_i32 : i32, i32
  }
  func.func @transform_1(%arg0: i32) -> (i32, i32) {
    %c0_i32 = arith.constant 0 : i32
    %c0_i32_0 = arith.constant 0 : i32
    %c0_i32_1 = arith.constant 0 : i32
    return %c0_i32, %c0_i32_0 : i32, i32
  }
  func.func @transform_2(%arg0: i32) -> (i32, i32) {
    %c0_i32 = arith.constant 0 : i32
    %c0_i32_0 = arith.constant 0 : i32
    %c0_i32_1 = arith.constant 0 : i32
    return %c0_i32, %c0_i32_0 : i32, i32
  }
  func.func @transform_3(%arg0: i32) -> (i32, i32) {
    %c0_i32 = arith.constant 0 : i32
    %c0_i32_0 = arith.constant 0 : i32
    %c0_i32_1 = arith.constant 0 : i32
    return %c0_i32, %c0_i32_0 : i32, i32
  }
  func.func @transform_4(%arg0: i32) -> (i32, i32) {
    %c0_i32 = arith.constant 0 : i32
    %c0_i32_0 = arith.constant 0 : i32
    %c0_i32_1 = arith.constant 0 : i32
    return %c0_i32, %c0_i32_0 : i32, i32
  }
  func.func @transform_5(%arg0: i32) -> (i32, i32) {
    %c0_i32 = arith.constant 0 : i32
    %c0_i32_0 = arith.constant 0 : i32
    return %arg0, %c0_i32 : i32, i32
  }
}

</mosaic_0001>

<llo_original>
// kernel: tpu_custom_call.1
$region0: #{tpu_custom_call.1}
  #allocation0 [shape = 'u32[]', space=smem, size = 0x4, offset = 0x4, fixed_abs, tag = 'smem constant byte address 0x4 - core index']
  #allocation1 [shape = 'u32[144,128]{1,0:T(1,128)}', space=vmem, size = 0x12000, scoped, tag = 'internal scratch']
  #allocation2 [shape = 'f32[1,1]{1,0:T(1,128)S(6)}', space=smem, size = 0x200, scoped, tag = 'scoped memory for tpu_custom_call.1']
  %s0 = inlined_call_operand.hbm [shape: bf16[8,784], index: 0, kind: input, shape index: {}]
  %s1 = inlined_call_operand.hbm [shape: bf16[784,128], index: 1, kind: input, shape index: {}]
  %s2 = inlined_call_operand.vmem [shape: f32[1,128], index: 2, kind: input, shape index: {}]
  %s3 = inlined_call_operand.vmem [shape: bf16[8,128], index: 3, kind: input, shape index: {}]
  %s4 = inlined_call_operand.<no memory space> [shape: f32[1,1], index: 4, kind: input, shape index: {}]
  %s5 = inlined_call_operand.hbm [shape: f32[8,8], index: 5, kind: output, shape index: {}]
  %s6 = sld [smem:[#allocation0]]
  $region38: #{tpu_custom_call.1} parent=0
    _
  %s8 = ssub.s32 1, %s6
  %s9 = scalar_select 0, %s8, %s6
  %10 = sst [smem:[#allocation2]] %s4
  $region1: #{tpu_custom_call.1} parent=0
    #allocation3 [shape = 'u8[14336]{0}', space=vmem, size = 0x3800, scoped, tag = 'input window, operand 0, single buffered']
    #allocation4 [shape = 's32[1]{0}', space=sflag, size = 0x4, scoped, tag = 'scoped memory for tpu_custom_call.1']
    #allocation5 [shape = 's32[1]{0}', space=sflag, size = 0x4, scoped, tag = 'scoped memory for tpu_custom_call.1']
    #allocation6 [shape = 'u8[200704]{0}', space=vmem, size = 0x31000, scoped, tag = 'input window, operand 1, single buffered']
    #allocation7 [shape = 's32[1]{0}', space=sflag, size = 0x4, scoped, tag = 'scoped memory for tpu_custom_call.1']
    #allocation8 [shape = 'u8[4096]{0}', space=vmem, size = 0x1000, scoped, tag = 'output window, operand 0, single buffered']
    %11 = vsyncpa [#allocation4], 0
    %12 = vsyncpa [#allocation7], 0
    %13 = vsyncpa [#allocation5], 0
    // Predicated region
    $region2: #{tpu_custom_call.1} parent=1 // pred_check
      _
    $region3: #{tpu_custom_call.1} parent=1 // pred_check_branch
      %15 = sbr.rel (0) target = $region5
    $region4: #{tpu_custom_call.1} parent=1 // pred_region
      %s17 = ssub.s32 448, 448
      %18 = vsyncadd [#allocation4], %s17
      %s20 = sshll.u32 [#allocation3], 4
      %s21 = int_to_ptr.vmem [resolvable:$true] %s20
      %23 = dma.hbm_to_vmem [thread:$0]  %s0, 448, %s21, [#allocation4]
    $region5: #{tpu_custom_call.1} parent=1 // pred_fallthru
      _
    // Predicated region
    $region6: #{tpu_custom_call.1} parent=1 // pred_check
      _
    $region7: #{tpu_custom_call.1} parent=1 // pred_check_branch
      %25 = sbr.rel (0) target = $region9
    $region8: #{tpu_custom_call.1} parent=1 // pred_region
      %s27 = ssub.s32 6272, 6272
      %28 = vsyncadd [#allocation7], %s27
      %s29 = sshll.u32 [#allocation6], 4
      %s30 = int_to_ptr.vmem [resolvable:$true] %s29
      %35 = dma.hbm_to_vmem [thread:$0]  %s1, 6272, %s30, [#allocation7], 64, 64, 4
    $region9: #{tpu_custom_call.1} parent=1 // pred_fallthru
      _
    // Predicated region
    $region10: #{tpu_custom_call.1} parent=1 // pred_check
      _
    $region11: #{tpu_custom_call.1} parent=1 // pred_check_branch
      %37 = sbr.rel (0) target = $region13
    $region12: #{tpu_custom_call.1} parent=1 // pred_region
      _
    $region13: #{tpu_custom_call.1} parent=1 // pred_fallthru
      _
    // Predicated region
    $region14: #{tpu_custom_call.1} parent=1 // pred_check
      _
    $region15: #{tpu_custom_call.1} parent=1 // pred_check_branch
      %39 = sbr.rel (0) target = $region17
    $region16: #{tpu_custom_call.1} parent=1 // pred_region
      _
    $region17: #{tpu_custom_call.1} parent=1 // pred_fallthru
      _
    // Predicated region
    $region18: #{tpu_custom_call.1} parent=1 // pred_check
      _
    $region19: #{tpu_custom_call.1} parent=1 // pred_check_branch
      %41 = sbr.rel (0) target = $region21
    $region20: #{tpu_custom_call.1} parent=1 // pred_region
      _
    $region21: #{tpu_custom_call.1} parent=1 // pred_fallthru
      _
    // Predicated region
    $region22: #{tpu_custom_call.1} parent=1 // pred_check
      _
    $region23: #{tpu_custom_call.1} parent=1 // pred_check_branch
      %43 = sbr.rel (0) target = $region25
    $region24: #{tpu_custom_call.1} parent=1 // pred_region
      %44 = dma.done [#allocation4], 448
    $region25: #{tpu_custom_call.1} parent=1 // pred_fallthru
      _
    // Predicated region
    $region26: #{tpu_custom_call.1} parent=1 // pred_check
      _
    $region27: #{tpu_custom_call.1} parent=1 // pred_check_branch
      %46 = sbr.rel (0) target = $region29
    $region28: #{tpu_custom_call.1} parent=1 // pred_region
      %47 = dma.done [#allocation7], 6272
    $region29: #{tpu_custom_call.1} parent=1 // pred_fallthru
      _
    %v49 = vld [vmem:[#allocation3] sm:$0xff]
    %v50 = vld [vmem:[#allocation3 + $0x8] sm:$0xff]
    %v51 = vld [vmem:[#allocation3 + $0x10] sm:$0xff]
    %v52 = vld [vmem:[#allocation3 + $0x18] sm:$0xf]
    %v53 = vld [vmem:[#allocation6] sm:$0xf]
    %v54 = vld [vmem:[#allocation6 + $0x4] sm:$0xf]
    %v55 = vld [vmem:[#allocation6 + $0x8] sm:$0xf]
    %v56 = vld [vmem:[#allocation6 + $0xc] sm:$0xf]
    %v57 = vld [vmem:[#allocation6 + $0x10] sm:$0xf]
    %v58 = vld [vmem:[#allocation6 + $0x14] sm:$0xf]
    %v59 = vld [vmem:[#allocation6 + $0x18] sm:$0xf]
    %v60 = vld [vmem:[#allocation6 + $0x1c] sm:$0xf]
    %v61 = vld [vmem:[#allocation6 + $0x20] sm:$0xf]
    %v62 = vld [vmem:[#allocation6 + $0x24] sm:$0xf]
    %v63 = vld [vmem:[#allocation6 + $0x28] sm:$0xf]
    %v64 = vld [vmem:[#allocation6 + $0x2c] sm:$0xf]
    %v65 = vld [vmem:[#allocation6 + $0x30] sm:$0xf]
    %v66 = vld [vmem:[#allocation6 + $0x34] sm:$0xf]
    %v67 = vld [vmem:[#allocation6 + $0x38] sm:$0xf]
    %v68 = vld [vmem:[#allocation6 + $0x3c] sm:$0xf]
    %v69 = vld [vmem:[#allocation6 + $0x40] sm:$0xf]
    %v70 = vld [vmem:[#allocation6 + $0x44] sm:$0xf]
    %v71 = vld [vmem:[#allocation6 + $0x48] sm:$0xf]
    %v72 = vld [vmem:[#allocation6 + $0x4c] sm:$0xf]
    %v73 = vld [vmem:[#allocation6 + $0x50] sm:$0xf]
    %v74 = vld [vmem:[#allocation6 + $0x54] sm:$0xf]
    %v75 = vld [vmem:[#allocation6 + $0x58] sm:$0xf]
    %v76 = vld [vmem:[#allocation6 + $0x5c] sm:$0xf]
    %v77 = vld [vmem:[#allocation6 + $0x60] sm:$0xf]
    %v78 = vld [vmem:[#allocation6 + $0x64] sm:$0xf]
    %v79 = vld [vmem:[#allocation6 + $0x68] sm:$0xf]
    %v80 = vld [vmem:[#allocation6 + $0x6c] sm:$0xf]
    %v81 = vld [vmem:[#allocation6 + $0x70] sm:$0xf]
    %v82 = vld [vmem:[#allocation6 + $0x74] sm:$0xf]
    %v83 = vld [vmem:[#allocation6 + $0x78] sm:$0xf]
    %v84 = vld [vmem:[#allocation6 + $0x7c] sm:$0xf]
    %v85 = vld [vmem:[#allocation6 + $0x80] sm:$0xf]
    %v86 = vld [vmem:[#allocation6 + $0x84] sm:$0xf]
    %v87 = vld [vmem:[#allocation6 + $0x88] sm:$0xf]
    %v88 = vld [vmem:[#allocation6 + $0x8c] sm:$0xf]
    %v89 = vld [vmem:[#allocation6 + $0x90] sm:$0xf]
    %v90 = vld [vmem:[#allocation6 + $0x94] sm:$0xf]
    %v91 = vld [vmem:[#allocation6 + $0x98] sm:$0xf]
    %v92 = vld [vmem:[#allocation6 + $0x9c] sm:$0xf]
    %v93 = vld [vmem:[#allocation6 + $0xa0] sm:$0xf]
    %v94 = vld [vmem:[#allocation6 + $0xa4] sm:$0xf]
    %v95 = vld [vmem:[#allocation6 + $0xa8] sm:$0xf]
    %v96 = vld [vmem:[#allocation6 + $0xac] sm:$0xf]
    %v97 = vld [vmem:[#allocation6 + $0xb0] sm:$0xf]
    %v98 = vld [vmem:[#allocation6 + $0xb4] sm:$0xf]
    %v99 = vld [vmem:[#allocation6 + $0xb8] sm:$0xf]
    %v100 = vld [vmem:[#allocation6 + $0xbc] sm:$0xf]
    %v101 = vld [vmem:[#allocation6 + $0xc0] sm:$0xf]
    %v102 = vld [vmem:[#allocation6 + $0xc4] sm:$0xf]
    %v103 = vld [vmem:[#allocation6 + $0xc8] sm:$0xf]
    %v104 = vld [vmem:[#allocation6 + $0xcc] sm:$0xf]
    %v105 = vld [vmem:[#allocation6 + $0xd0] sm:$0xf]
    %v106 = vld [vmem:[#allocation6 + $0xd4] sm:$0xf]
    %v107 = vld [vmem:[#allocation6 + $0xd8] sm:$0xf]
    %v108 = vld [vmem:[#allocation6 + $0xdc] sm:$0xf]
    %v109 = vld [vmem:[#allocation6 + $0xe0] sm:$0xf]
    %v110 = vld [vmem:[#allocation6 + $0xe4] sm:$0xf]
    %v111 = vld [vmem:[#allocation6 + $0xe8] sm:$0xf]
    %v112 = vld [vmem:[#allocation6 + $0xec] sm:$0xf]
    %v113 = vld [vmem:[#allocation6 + $0xf0] sm:$0xf]
    %v114 = vld [vmem:[#allocation6 + $0xf4] sm:$0xf]
    %v115 = vld [vmem:[#allocation6 + $0xf8] sm:$0xf]
    %v116 = vld [vmem:[#allocation6 + $0xfc] sm:$0xf]
    %v117 = vld [vmem:[#allocation6 + $0x100] sm:$0xf]
    %v118 = vld [vmem:[#allocation6 + $0x104] sm:$0xf]
    %v119 = vld [vmem:[#allocation6 + $0x108] sm:$0xf]
    %v120 = vld [vmem:[#allocation6 + $0x10c] sm:$0xf]
    %v121 = vld [vmem:[#allocation6 + $0x110] sm:$0xf]
    %v122 = vld [vmem:[#allocation6 + $0x114] sm:$0xf]
    %v123 = vld [vmem:[#allocation6 + $0x118] sm:$0xf]
    %v124 = vld [vmem:[#allocation6 + $0x11c] sm:$0xf]
    %v125 = vld [vmem:[#allocation6 + $0x120] sm:$0xf]
    %v126 = vld [vmem:[#allocation6 + $0x124] sm:$0xf]
    %v127 = vld [vmem:[#allocation6 + $0x128] sm:$0xf]
    %v128 = vld [vmem:[#allocation6 + $0x12c] sm:$0xf]
    %v129 = vld [vmem:[#allocation6 + $0x130] sm:$0xf]
    %v130 = vld [vmem:[#allocation6 + $0x134] sm:$0xf]
    %v131 = vld [vmem:[#allocation6 + $0x138] sm:$0xf]
    %v132 = vld [vmem:[#allocation6 + $0x13c] sm:$0xf]
    %v133 = vld [vmem:[#allocation6 + $0x140] sm:$0xf]
    %v134 = vld [vmem:[#allocation6 + $0x144] sm:$0xf]
    %v135 = vld [vmem:[#allocation6 + $0x148] sm:$0xf]
    %v136 = vld [vmem:[#allocation6 + $0x14c] sm:$0xf]
    %v137 = vld [vmem:[#allocation6 + $0x150] sm:$0xf]
    %v138 = vld [vmem:[#allocation6 + $0x154] sm:$0xf]
    %v139 = vld [vmem:[#allocation6 + $0x158] sm:$0xf]
    %v140 = vld [vmem:[#allocation6 + $0x15c] sm:$0xf]
    %v141 = vld [vmem:[#allocation6 + $0x160] sm:$0xf]
    %v142 = vld [vmem:[#allocation6 + $0x164] sm:$0xf]
    %v143 = vld [vmem:[#allocation6 + $0x168] sm:$0xf]
    %v144 = vld [vmem:[#allocation6 + $0x16c] sm:$0xf]
    %v145 = vld [vmem:[#allocation6 + $0x170] sm:$0xf]
    %v146 = vld [vmem:[#allocation6 + $0x174] sm:$0xf]
    %v147 = vld [vmem:[#allocation6 + $0x178] sm:$0xf]
    %v148 = vld [vmem:[#allocation6 + $0x17c] sm:$0xf]
    %v149 = vld [vmem:[#allocation6 + $0x180] sm:$0xf]
    %v150 = vld [vmem:[#allocation6 + $0x184] sm:$0xf]
    %v151 = vld [vmem:[%s2] sm:$0x1]
    %v153 = vlaneseq
    %v154 = vshrl.u32 %v153, 7
    %v155 = vsub.s32 0, %v154
    %v156 = vrot.slane %v151, %v155
    %v162 = vunpack.c.l.b16 %v49
    %v163 = vunpack.c.h.b16 %v49
    %v164 = vunpack.c.l.b16 %v50
    %v165 = vunpack.c.h.b16 %v50
    %v166 = vunpack.c.l.b16 %v51
    %v167 = vunpack.c.h.b16 %v51
    %v168 = vunpack.c.l.b16 %v52
    %v169 = vpack.c.b16 %v162, %v162
    %v170 = vpack.c.b16 %v163, %v163
    %v171 = vpack.c.b16 %v164, %v164
    %v172 = vpack.c.b16 %v165, %v165
    %v173 = vpack.c.b16 %v166, %v166
    %v174 = vpack.c.b16 %v167, %v167
    %v175 = vpack.c.b16 %v168, %v168
    %v280 = vunpack.c.l.b16 %v53
    %v281 = vunpack.c.l.b16 %v54
    %v282 = vunpack.c.l.b16 %v55
    %v283 = vunpack.c.l.b16 %v56
    %v284 = vunpack.c.l.b16 %v57
    %v285 = vunpack.c.l.b16 %v58
    %v286 = vunpack.c.l.b16 %v59
    %v287 = vunpack.c.l.b16 %v60
    %v288 = vunpack.c.l.b16 %v61
    %v289 = vunpack.c.l.b16 %v62
    %v290 = vunpack.c.l.b16 %v63
    %v291 = vunpack.c.l.b16 %v64
    %v292 = vunpack.c.l.b16 %v65
    %v293 = vunpack.c.l.b16 %v66
    %v294 = vunpack.c.l.b16 %v67
    %v295 = vunpack.c.l.b16 %v68
    %v296 = vunpack.c.l.b16 %v69
    %v297 = vunpack.c.l.b16 %v70
    %v298 = vunpack.c.l.b16 %v71
    %v299 = vunpack.c.l.b16 %v72
    %v300 = vunpack.c.l.b16 %v73
    %v301 = vunpack.c.l.b16 %v74
    %v302 = vunpack.c.l.b16 %v75
    %v303 = vunpack.c.l.b16 %v76
    %v304 = vunpack.c.l.b16 %v77
    %v305 = vunpack.c.l.b16 %v78
    %v306 = vunpack.c.l.b16 %v79
    %v307 = vunpack.c.l.b16 %v80
    %v308 = vunpack.c.l.b16 %v81
    %v309 = vunpack.c.l.b16 %v82
    %v310 = vunpack.c.l.b16 %v83
    %v311 = vunpack.c.l.b16 %v84
    %v312 = vunpack.c.l.b16 %v85
    %v313 = vunpack.c.l.b16 %v86
    %v314 = vunpack.c.l.b16 %v87
    %v315 = vunpack.c.l.b16 %v88
    %v316 = vunpack.c.l.b16 %v89
    %v317 = vunpack.c.l.b16 %v90
    %v318 = vunpack.c.l.b16 %v91
    %v319 = vunpack.c.l.b16 %v92
    %v320 = vunpack.c.l.b16 %v93
    %v321 = vunpack.c.l.b16 %v94
    %v322 = vunpack.c.l.b16 %v95
    %v323 = vunpack.c.l.b16 %v96
    %v324 = vunpack.c.l.b16 %v97
    %v325 = vunpack.c.l.b16 %v98
    %v326 = vunpack.c.l.b16 %v99
    %v327 = vunpack.c.l.b16 %v100
    %v328 = vunpack.c.l.b16 %v101
    %v329 = vunpack.c.l.b16 %v102
    %v330 = vunpack.c.l.b16 %v103
    %v331 = vunpack.c.l.b16 %v104
    %v332 = vunpack.c.l.b16 %v105
    %v333 = vunpack.c.l.b16 %v106
    %v334 = vunpack.c.l.b16 %v107
    %v335 = vunpack.c.l.b16 %v108
    %v336 = vunpack.c.l.b16 %v109
    %v337 = vunpack.c.l.b16 %v110
    %v338 = vunpack.c.l.b16 %v111
    %v339 = vunpack.c.l.b16 %v112
    %v340 = vunpack.c.l.b16 %v113
    %v341 = vunpack.c.l.b16 %v114
    %v342 = vunpack.c.l.b16 %v115
    %v343 = vunpack.c.l.b16 %v116
    %v344 = vunpack.c.l.b16 %v117
    %v345 = vunpack.c.l.b16 %v118
    %v346 = vunpack.c.l.b16 %v119
    %v347 = vunpack.c.l.b16 %v120
    %v348 = vunpack.c.l.b16 %v121
    %v349 = vunpack.c.l.b16 %v122
    %v350 = vunpack.c.l.b16 %v123
    %v351 = vunpack.c.l.b16 %v124
    %v352 = vunpack.c.l.b16 %v125
    %v353 = vunpack.c.l.b16 %v126
    %v354 = vunpack.c.l.b16 %v127
    %v355 = vunpack.c.l.b16 %v128
    %v356 = vunpack.c.l.b16 %v129
    %v357 = vunpack.c.l.b16 %v130
    %v358 = vunpack.c.l.b16 %v131
    %v359 = vunpack.c.l.b16 %v132
    %v360 = vunpack.c.l.b16 %v133
    %v361 = vunpack.c.l.b16 %v134
    %v362 = vunpack.c.l.b16 %v135
    %v363 = vunpack.c.l.b16 %v136
    %v364 = vunpack.c.l.b16 %v137
    %v365 = vunpack.c.l.b16 %v138
    %v366 = vunpack.c.l.b16 %v139
    %v367 = vunpack.c.l.b16 %v140
    %v368 = vunpack.c.l.b16 %v141
    %v369 = vunpack.c.l.b16 %v142
    %v370 = vunpack.c.l.b16 %v143
    %v371 = vunpack.c.l.b16 %v144
    %v372 = vunpack.c.l.b16 %v145
    %v373 = vunpack.c.l.b16 %v146
    %v374 = vunpack.c.l.b16 %v147
    %v375 = vunpack.c.l.b16 %v148
    %v376 = vunpack.c.l.b16 %v149
    %v377 = vunpack.c.l.b16 %v150
    %v378 = vpack.c.b16 %v281, %v280
    %v379 = vpack.c.b16 %v283, %v282
    %v380 = vpack.c.b16 %v285, %v284
    %v381 = vpack.c.b16 %v287, %v286
    %v382 = vpack.c.b16 %v289, %v288
    %v383 = vpack.c.b16 %v291, %v290
    %v384 = vpack.c.b16 %v293, %v292
    %v385 = vpack.c.b16 %v295, %v294
    %v386 = vpack.c.b16 %v297, %v296
    %v387 = vpack.c.b16 %v299, %v298
    %v388 = vpack.c.b16 %v301, %v300
    %v389 = vpack.c.b16 %v303, %v302
    %v390 = vpack.c.b16 %v305, %v304
    %v391 = vpack.c.b16 %v307, %v306
    %v392 = vpack.c.b16 %v309, %v308
    %v393 = vpack.c.b16 %v311, %v310
    %v394 = vpack.c.b16 %v313, %v312
    %v395 = vpack.c.b16 %v315, %v314
    %v396 = vpack.c.b16 %v317, %v316
    %v397 = vpack.c.b16 %v319, %v318
    %v398 = vpack.c.b16 %v321, %v320
    %v399 = vpack.c.b16 %v323, %v322
    %v400 = vpack.c.b16 %v325, %v324
    %v401 = vpack.c.b16 %v327, %v326
    %v402 = vpack.c.b16 %v329, %v328
    %v403 = vpack.c.b16 %v331, %v330
    %v404 = vpack.c.b16 %v333, %v332
    %v405 = vpack.c.b16 %v335, %v334
    %v406 = vpack.c.b16 %v337, %v336
    %v407 = vpack.c.b16 %v339, %v338
    %v408 = vpack.c.b16 %v341, %v340
    %v409 = vpack.c.b16 %v343, %v342
    %v410 = vpack.c.b16 %v345, %v344
    %v411 = vpack.c.b16 %v347, %v346
    %v412 = vpack.c.b16 %v349, %v348
    %v413 = vpack.c.b16 %v351, %v350
    %v414 = vpack.c.b16 %v353, %v352
    %v415 = vpack.c.b16 %v355, %v354
    %v416 = vpack.c.b16 %v357, %v356
    %v417 = vpack.c.b16 %v359, %v358
    %v418 = vpack.c.b16 %v361, %v360
    %v419 = vpack.c.b16 %v363, %v362
    %v420 = vpack.c.b16 %v365, %v364
    %v421 = vpack.c.b16 %v367, %v366
    %v422 = vpack.c.b16 %v369, %v368
    %v423 = vpack.c.b16 %v371, %v370
    %v424 = vpack.c.b16 %v373, %v372
    %v425 = vpack.c.b16 %v375, %v374
    %v426 = vpack.c.b16 %v377, %v376
    %vm476 = vcmask 130048
    %v478 = vsel %vm476, %v175, 0
    %480 = vmatprep.subr.bf16.mxu0 0
    %481 = vmatpush1.bf16.msra.mxu0 %v378
    %482 = vmatprep.subr.bf16.mxu0 0
    %483 = vmatpush1.bf16.msra.mxu0 %v379
    %484 = vmatprep.subr.bf16.mxu0 0
    %485 = vmatpush1.bf16.msra.mxu0 %v380
    %486 = vmatprep.subr.bf16.mxu0 0
    %487 = vmatpush1.bf16.msra.mxu0 %v381
    %488 = vmatprep.subr.bf16.mxu0 0
    %489 = vmatpush1.bf16.msra.mxu0 %v382
    %490 = vmatprep.subr.bf16.mxu0 0
    %491 = vmatpush1.bf16.msra.mxu0 %v383
    %492 = vmatprep.subr.bf16.mxu0 0
    %493 = vmatpush1.bf16.msra.mxu0 %v384
    %494 = vmatprep.subr.bf16.mxu0 0
    %495 = vmatpush1.bf16.msra.mxu0 %v385
    %496 = vmatprep.subr.bf16.mxu0 0
    %497 = vmatpush1.bf16.msra.mxu0 %v386
    %498 = vmatprep.subr.bf16.mxu0 0
    %499 = vmatpush1.bf16.msra.mxu0 %v387
    %500 = vmatprep.subr.bf16.mxu0 0
    %501 = vmatpush1.bf16.msra.mxu0 %v388
    %502 = vmatprep.subr.bf16.mxu0 0
    %503 = vmatpush1.bf16.msra.mxu0 %v389
    %504 = vmatprep.subr.bf16.mxu0 0
    %505 = vmatpush1.bf16.msra.mxu0 %v390
    %506 = vmatprep.subr.bf16.mxu0 0
    %507 = vmatpush1.bf16.msra.mxu0 %v391
    %508 = vmatprep.subr.bf16.mxu0 0
    %509 = vmatpush1.bf16.msra.mxu0 %v392
    %510 = vmatprep.subr.bf16.mxu0 0
    %511 = vmatpush1.bf16.msra.mxu0 %v393
    %512 = vmatprep.mubr.bf16.mxu0 %v170
    %513 = vmatmul.mubr.bf16.gmra.mrb[0].mxu0 %v169
    %v514 = vpop.f32.mrb[0].mxu0
    %v515 = vadd.f32 %v156, %v514
    %v516 = vpop.f32.mrb[0].mxu0
    %v517 = vpop.f32.mrb[0].mxu0
    %v518 = vpop.f32.mrb[0].mxu0
    %519 = vdwg.mxu0
    %520 = vmatprep.subr.bf16.mxu0 0
    %521 = vmatpush1.bf16.msra.mxu0 %v394
    %522 = vmatprep.subr.bf16.mxu0 0
    %523 = vmatpush1.bf16.msra.mxu0 %v395
    %524 = vmatprep.subr.bf16.mxu0 0
    %525 = vmatpush1.bf16.msra.mxu0 %v396
    %526 = vmatprep.subr.bf16.mxu0 0
    %527 = vmatpush1.bf16.msra.mxu0 %v397
    %528 = vmatprep.subr.bf16.mxu0 0
    %529 = vmatpush1.bf16.msra.mxu0 %v398
    %530 = vmatprep.subr.bf16.mxu0 0
    %531 = vmatpush1.bf16.msra.mxu0 %v399
    %532 = vmatprep.subr.bf16.mxu0 0
    %533 = vmatpush1.bf16.msra.mxu0 %v400
    %534 = vmatprep.subr.bf16.mxu0 0
    %535 = vmatpush1.bf16.msra.mxu0 %v401
    %536 = vmatprep.subr.bf16.mxu0 0
    %537 = vmatpush1.bf16.msra.mxu0 %v402
    %538 = vmatprep.subr.bf16.mxu0 0
    %539 = vmatpush1.bf16.msra.mxu0 %v403
    %540 = vmatprep.subr.bf16.mxu0 0
    %541 = vmatpush1.bf16.msra.mxu0 %v404
    %542 = vmatprep.subr.bf16.mxu0 0
    %543 = vmatpush1.bf16.msra.mxu0 %v405
    %544 = vmatprep.subr.bf16.mxu0 0
    %545 = vmatpush1.bf16.msra.mxu0 %v406
    %546 = vmatprep.subr.bf16.mxu0 0
    %547 = vmatpush1.bf16.msra.mxu0 %v407
    %548 = vmatprep.subr.bf16.mxu0 0
    %549 = vmatpush1.bf16.msra.mxu0 %v408
    %550 = vmatprep.subr.bf16.mxu0 0
    %551 = vmatpush1.bf16.msra.mxu0 %v409
    %552 = vmatprep.mubr.bf16.mxu0 %v172
    %553 = vmatmul.mubr.bf16.gmra.mrb[0].mxu0 %v171
    %v554 = vpop.f32.mrb[0].mxu0
    %v555 = vadd.f32 %v515, %v554
    %v556 = vpop.f32.mrb[0].mxu0
    %v557 = vpop.f32.mrb[0].mxu0
    %v558 = vpop.f32.mrb[0].mxu0
    %559 = vdwg.mxu0
    %560 = vmatprep.subr.bf16.mxu0 0
    %561 = vmatpush1.bf16.msra.mxu0 %v410
    %562 = vmatprep.subr.bf16.mxu0 0
    %563 = vmatpush1.bf16.msra.mxu0 %v411
    %564 = vmatprep.subr.bf16.mxu0 0
    %565 = vmatpush1.bf16.msra.mxu0 %v412
    %566 = vmatprep.subr.bf16.mxu0 0
    %567 = vmatpush1.bf16.msra.mxu0 %v413
    %568 = vmatprep.subr.bf16.mxu0 0
    %569 = vmatpush1.bf16.msra.mxu0 %v414
    %570 = vmatprep.subr.bf16.mxu0 0
    %571 = vmatpush1.bf16.msra.mxu0 %v415
    %572 = vmatprep.subr.bf16.mxu0 0
    %573 = vmatpush1.bf16.msra.mxu0 %v416
    %574 = vmatprep.subr.bf16.mxu0 0
    %575 = vmatpush1.bf16.msra.mxu0 %v417
    %576 = vmatprep.subr.bf16.mxu0 0
    %577 = vmatpush1.bf16.msra.mxu0 %v418
    %578 = vmatprep.subr.bf16.mxu0 0
    %579 = vmatpush1.bf16.msra.mxu0 %v419
    %580 = vmatprep.subr.bf16.mxu0 0
    %581 = vmatpush1.bf16.msra.mxu0 %v420
    %582 = vmatprep.subr.bf16.mxu0 0
    %583 = vmatpush1.bf16.msra.mxu0 %v421
    %584 = vmatprep.subr.bf16.mxu0 0
    %585 = vmatpush1.bf16.msra.mxu0 %v422
    %586 = vmatprep.subr.bf16.mxu0 0
    %587 = vmatpush1.bf16.msra.mxu0 %v423
    %588 = vmatprep.subr.bf16.mxu0 0
    %589 = vmatpush1.bf16.msra.mxu0 %v424
    %590 = vmatprep.subr.bf16.mxu0 0
    %591 = vmatpush1.bf16.msra.mxu0 %v425
    %592 = vmatprep.mubr.bf16.mxu0 %v174
    %593 = vmatmul.mubr.bf16.gmra.mrb[0].mxu0 %v173
    %v594 = vpop.f32.mrb[0].mxu0
    %v595 = vadd.f32 %v555, %v594
    %v596 = vpop.f32.mrb[0].mxu0
    %v597 = vpop.f32.mrb[0].mxu0
    %v598 = vpop.f32.mrb[0].mxu0
    %599 = vdwg.mxu0
    %600 = vmatprep.subr.bf16.mxu0 0
    %601 = vmatpush1.bf16.msra.mxu0 %v426
    %602 = vmatprep.subr.bf16.mxu0 0
    %603 = vmatpush1.bf16.msra.mxu0 0
    %604 = vmatprep.subr.bf16.mxu0 0
    %605 = vmatpush1.bf16.msra.mxu0 0
    %606 = vmatprep.subr.bf16.mxu0 0
    %607 = vmatpush1.bf16.msra.mxu0 0
    %608 = vmatprep.subr.bf16.mxu0 0
    %609 = vmatpush1.bf16.msra.mxu0 0
    %610 = vmatprep.subr.bf16.mxu0 0
    %611 = vmatpush1.bf16.msra.mxu0 0
    %612 = vmatprep.subr.bf16.mxu0 0
    %613 = vmatpush1.bf16.msra.mxu0 0
    %614 = vmatprep.subr.bf16.mxu0 0
    %615 = vmatpush1.bf16.msra.mxu0 0
    %616 = vmatprep.subr.bf16.mxu0 0
    %617 = vmatpush1.bf16.msra.mxu0 0
    %618 = vmatprep.subr.bf16.mxu0 0
    %619 = vmatpush1.bf16.msra.mxu0 0
    %620 = vmatprep.subr.bf16.mxu0 0
    %621 = vmatpush1.bf16.msra.mxu0 0
    %622 = vmatprep.subr.bf16.mxu0 0
    %623 = vmatpush1.bf16.msra.mxu0 0
    %624 = vmatprep.subr.bf16.mxu0 0
    %625 = vmatpush1.bf16.msra.mxu0 0
    %626 = vmatprep.subr.bf16.mxu0 0
    %627 = vmatpush1.bf16.msra.mxu0 0
    %628 = vmatprep.subr.bf16.mxu0 0
    %629 = vmatpush1.bf16.msra.mxu0 0
    %630 = vmatprep.subr.bf16.mxu0 0
    %631 = vmatpush1.bf16.msra.mxu0 0
    %632 = vmatprep.mubr.bf16.mxu0 0
    %633 = vmatmul.mubr.bf16.gmra.mrb[0].mxu0 %v478
    %v634 = vpop.f32.mrb[0].mxu0
    %v635 = vadd.f32 %v595, %v634
    %v636 = vpop.f32.mrb[0].mxu0
    %v637 = vpop.f32.mrb[0].mxu0
    %v638 = vpop.f32.mrb[0].mxu0
    %639 = vdwg.mxu0
    %v640 = vmul.f32 %v635, 0.2
    %v641 = vmax.f32 %v635, %v640
    %v642 = vld [vmem:[%s3] sm:$0xf]
    %v643 = vpack.c.bf16 %v641, %v641
    %s644 = sld [smem:[#allocation2]]
    %v645 = vstv %s644
    %646 = vmatprep.subr.bf16.mxu0 0
    %647 = vmatpush1.bf16.xpose.msra.mxu0 %v643
    %648 = vmatprep.subr.bf16.mxu0 0
    %649 = vmatpush1.bf16.xpose.msra.mxu0 0
    %650 = vmatprep.subr.bf16.mxu0 0
    %651 = vmatpush1.bf16.xpose.msra.mxu0 0
    %652 = vmatprep.subr.bf16.mxu0 0
    %653 = vmatpush1.bf16.xpose.msra.mxu0 0
    %654 = vmatprep.subr.bf16.mxu0 0
    %655 = vmatpush1.bf16.xpose.msra.mxu0 0
    %656 = vmatprep.subr.bf16.mxu0 0
    %657 = vmatpush1.bf16.xpose.msra.mxu0 0
    %658 = vmatprep.subr.bf16.mxu0 0
    %659 = vmatpush1.bf16.xpose.msra.mxu0 0
    %660 = vmatprep.subr.bf16.mxu0 0
    %661 = vmatpush1.bf16.xpose.msra.mxu0 0
    %662 = vmatprep.subr.bf16.mxu0 0
    %663 = vmatpush1.bf16.xpose.msra.mxu0 0
    %664 = vmatprep.subr.bf16.mxu0 0
    %665 = vmatpush1.bf16.xpose.msra.mxu0 0
    %666 = vmatprep.subr.bf16.mxu0 0
    %667 = vmatpush1.bf16.xpose.msra.mxu0 0
    %668 = vmatprep.subr.bf16.mxu0 0
    %669 = vmatpush1.bf16.xpose.msra.mxu0 0
    %670 = vmatprep.subr.bf16.mxu0 0
    %671 = vmatpush1.bf16.xpose.msra.mxu0 0
    %672 = vmatprep.subr.bf16.mxu0 0
    %673 = vmatpush1.bf16.xpose.msra.mxu0 0
    %674 = vmatprep.subr.bf16.mxu0 0
    %675 = vmatpush1.bf16.xpose.msra.mxu0 0
    %676 = vmatprep.subr.bf16.mxu0 0
    %677 = vmatpush1.bf16.xpose.msra.mxu0 0
    %678 = vmatprep.mubr.bf16.mxu0 0
    %679 = vmatmul.mubr.bf16.gmra.mrb[0].mxu0 %v642
    %v680 = vpop.f32.mrb[0].mxu0
    %v681 = vadd.f32 %v645, %v680
    %v682 = vpop.f32.mrb[0].mxu0
    %v683 = vpop.f32.mrb[0].mxu0
    %v684 = vpop.f32.mrb[0].mxu0
    %685 = vdwg.mxu0
    %v686 = vsub.f32 0.0, %v681
    %v687 = vmul.f32 %v686, 1.442695
    %v688 = vpow.pop %v687
    %v689 = vadd.f32 %v688, 1.0
    %v690 = vrcp.pop %v689
    %vm691 = vcmask 64512
    %692 = vst.msk [vmem:[#allocation8] sm:$0xff] %vm691, %v690
    // Predicated region
    $region30: #{tpu_custom_call.1} parent=1 // pred_check
      _
    $region31: #{tpu_custom_call.1} parent=1 // pred_check_branch
      %694 = sbr.rel (0) target = $region33
    $region32: #{tpu_custom_call.1} parent=1 // pred_region
      %s696 = ssub.s32 128, 128
      %697 = vsyncadd [#allocation5], %s696
      %s699 = sshll.u32 [#allocation8], 4
      %s700 = int_to_ptr.vmem [resolvable:$true] %s699
      %702 = dma.vmem_to_hbm [thread:$0]  %s700, 128, %s5, [#allocation5]
    $region33: #{tpu_custom_call.1} parent=1 // pred_fallthru
      _
    // Predicated region
    $region34: #{tpu_custom_call.1} parent=1 // pred_check
      _
    $region35: #{tpu_custom_call.1} parent=1 // pred_check_branch
      %704 = sbr.rel (0) target = $region37
    $region36: #{tpu_custom_call.1} parent=1 // pred_region
      %705 = dma.done [#allocation5], 128
    $region37: #{tpu_custom_call.1} parent=1 // pred_fallthru
      _
    %706 = vsyncpa [#allocation4], 1
    %707 = vsyncpa [#allocation7], 1
    %708 = vsyncpa [#allocation5], 1

</llo_original>
